<compile_context>
chip_gen: v6e
topology: v6e:2x2x1
jax: 0.10.0
libtpu: 0.0.40
codegen_flags: <defaults>
</compile_context>

<pallas_src>
import jax
import jax.numpy as jnp
from jax.experimental import pallas as pl
from jax.experimental.pallas import tpu as pltpu


# --------------------------------------------------------------------------
# Kernel
# --------------------------------------------------------------------------
def _fused_mlp_kernel(x_ref, w1_ref, b1_ref, w2_ref, b2_ref, w3_ref, b3_ref,
                      o_ref):
    """Both 3-layer MLP heads fused.  Weights bf16, accumulation/bias/ReLU f32."""
    x = x_ref[...].astype(jnp.bfloat16)
    h = jnp.dot(x, w1_ref[...], preferred_element_type=jnp.float32)
    h = jnp.maximum(h + b1_ref[...], 0.0)
    h = jnp.dot(h.astype(jnp.bfloat16), w2_ref[...],
                preferred_element_type=jnp.float32)
    h = jnp.maximum(h + b2_ref[...], 0.0)
    h = jnp.dot(h.astype(jnp.bfloat16), w3_ref[...],
                preferred_element_type=jnp.float32)
    h = jnp.maximum(h + b3_ref[...], 0.0)
    o_ref[...] = h.astype(o_ref.dtype)


def _resident(shape):
    # Full-array block; same block every grid step => weights stay in VMEM.
    return pl.BlockSpec(shape, lambda i: tuple(0 for _ in shape))


@jax.jit
def fused_mlp_forward(x, packed_params):
    """Returns (actor_out, critic_out) — equivalent of MLP.forward."""
    w1, b1, w2, b2, w3, b3 = packed_params
    B, D = x.shape
    out_dim = w3.shape[1]                 # 4 * hidden  (both heads, lane-dense)
    tb = B if B <= 512 else 512           # batch tile (full batch if small)
    grid = (pl.cdiv(B, tb),)

    flops = 2 * B * (D * w1.shape[1]
                     + w2.shape[0] * w2.shape[1]
                     + w3.shape[0] * w3.shape[1])
    bytes_accessed = (x.size * x.dtype.itemsize
                      + B * out_dim * 4
                      + sum(p.size * p.dtype.itemsize for p in packed_params))

    out = pl.pallas_call(
        _fused_mlp_kernel,
        out_shape=jax.ShapeDtypeStruct((B, out_dim), jnp.float32),
        grid=grid,
        in_specs=[
            pl.BlockSpec((tb, D), lambda i: (i, 0)),          # x: tiled on batch
            _resident(w1.shape), _resident(b1.shape),
            _resident(w2.shape), _resident(b2.shape),
            _resident(w3.shape), _resident(b3.shape),
        ],
        out_specs=pl.BlockSpec((tb, out_dim), lambda i: (i, 0)),
        compiler_params=pltpu.CompilerParams(
            dimension_semantics=("parallel",)),
        cost_estimate=pl.CostEstimate(
            flops=flops, transcendentals=0, bytes_accessed=bytes_accessed),
    )(x, w1, b1, w2, b2, w3, b3)

    head = out_dim // 2
    return out[:, :head], out[:, head:]


# --------------------------------------------------------------------------
# Parameter construction / packing
# --------------------------------------------------------------------------
def _init_linear(key, fan_in, fan_out):
    """PyTorch nn.Linear default init; stored as (in, out) so y = x @ W + b."""
    kw, kb = jax.random.split(key)
    bound = 1.0 / jnp.sqrt(jnp.float32(fan_in))
    w = jax.random.uniform(kw, (fan_in, fan_out), jnp.float32, -bound, bound)
    b = jax.random.uniform(kb, (fan_out,), jnp.float32, -bound, bound)
    return w, b


def init_net_params(key, input_dim, hidden_size):
    """One head: Linear(D,H) -> Linear(H,2H) -> Linear(2H,2H)."""
    dims = [(input_dim, hidden_size),
            (hidden_size, 2 * hidden_size),
            (2 * hidden_size, 2 * hidden_size)]
    params = []
    for fan_in, fan_out in dims:
        key, sub = jax.random.split(key)
        params.append(_init_linear(sub, fan_in, fan_out))
    return key, params


def _block_diag(a, b):
    z_tr = jnp.zeros((a.shape[0], b.shape[1]), a.dtype)
    z_bl = jnp.zeros((b.shape[0], a.shape[1]), a.dtype)
    return jnp.concatenate(
        [jnp.concatenate([a, z_tr], axis=1),
         jnp.concatenate([z_bl, b], axis=1)], axis=0)


def pack_two_heads(policy_params, value_params, w_dtype=jnp.bfloat16):
    """Pack policy+value nets into one block-structured parameter set.

    Layer 1: output-axis concat (shared input x).  Layers 2/3: block-diagonal,
    so there is no cross-talk between heads and each layer is a single matmul
    producing the concatenated [policy | value] activation slab.
    """
    (pw1, pb1), (pw2, pb2), (pw3, pb3) = policy_params
    (vw1, vb1), (vw2, vb2), (vw3, vb3) = value_params
    w1 = jnp.concatenate([pw1, vw1], axis=1).astype(w_dtype)   # (D, 2H)
    w2 = _block_diag(pw2, vw2).astype(w_dtype)                 # (2H, 4H)
    w3 = _block_diag(pw3, vw3).astype(w_dtype)                 # (4H, 4H)
    b1 = jnp.concatenate([pb1, vb1])[None, :]                  # (1, 2H)  f32
    b2 = jnp.concatenate([pb2, vb2])[None, :]                  # (1, 4H)  f32
    b3 = jnp.concatenate([pb3, vb3])[None, :]                  # (1, 4H)  f32
    return (w1, b1, w2, b2, w3, b3)


# --------------------------------------------------------------------------
# References
# --------------------------------------------------------------------------
def _ref_net_f32(x, params):
    h = x
    for w, b in params:
        h = jnp.maximum(
            jnp.dot(h, w, precision=jax.lax.Precision.HIGHEST) + b, 0.0)
    return h


def _ref_net_bf16(x, params):
    """Mimics the kernel numerics: bf16 matmul operands, f32 accumulation."""
    h = x
    for w, b in params:
        hb = h.astype(jnp.bfloat16).astype(jnp.float32)
        wb = w.astype(jnp.bfloat16).astype(jnp.float32)
        h = jnp.maximum(
            jnp.dot(hb, wb, precision=jax.lax.Precision.HIGHEST) + b, 0.0)
    return h


# --------------------------------------------------------------------------
# Demo / correctness check
# --------------------------------------------------------------------------
if __name__ == "__main__":
    batch = 8
    input_dim = 8      # LunarLander-v2 observation dim
    hidden_size = 32   # small demo size (module default is 64)

    key = jax.random.PRNGKey(0)
    key, kx = jax.random.split(key)
    x = jax.random.normal(kx, (batch, input_dim), jnp.float32)

    key, policy_params = init_net_params(key, input_dim, hidden_size)
    key, value_params = init_net_params(key, input_dim, hidden_size)
    packed = pack_two_heads(policy_params, value_params)

    actor_out, critic_out = fused_mlp_forward(x, packed)
    jax.block_until_ready((actor_out, critic_out))

    # Tight check against a reference that mimics the kernel's bf16 matmuls.
    ref_a_bf16 = _ref_net_bf16(x, policy_params)
    ref_c_bf16 = _ref_net_bf16(x, value_params)
    assert jnp.allclose(actor_out, ref_a_bf16, atol=1e-3, rtol=1e-3)
    assert jnp.allclose(critic_out, ref_c_bf16, atol=1e-3, rtol=1e-3)

    # Loose semantic check against the pure-f32 PyTorch-equivalent math.
    ref_a_f32 = _ref_net_f32(x, policy_params)
    ref_c_f32 = _ref_net_f32(x, value_params)
    assert jnp.allclose(actor_out, ref_a_f32, atol=5e-2, rtol=5e-2)
    assert jnp.allclose(critic_out, ref_c_f32, atol=5e-2, rtol=5e-2)

    assert actor_out.shape == (batch, 2 * hidden_size)
    assert critic_out.shape == (batch, 2 * hidden_size)

    print("KERNEL_OK")
</pallas_src>

<mosaic_0001>
module attributes {stable_mosaic.version = 11 : i64} {
  func.func @_fused_mlp_kernel(%arg0: i32, %arg1: memref<8x8xf32, #tpu.memory_space<vmem>>, %arg2: memref<8x64xbf16, #tpu.memory_space<vmem>>, %arg3: memref<1x64xf32, #tpu.memory_space<vmem>>, %arg4: memref<64x128xbf16, #tpu.memory_space<vmem>>, %arg5: memref<1x128xf32, #tpu.memory_space<vmem>>, %arg6: memref<128x128xbf16, #tpu.memory_space<vmem>>, %arg7: memref<1x128xf32, #tpu.memory_space<vmem>>, %arg8: memref<8x128xf32, #tpu.memory_space<vmem>>) attributes {dimension_semantics = [#tpu.dimension_semantics<parallel>], iteration_bounds = array<i64: 1>, scalar_prefetch = 0 : i64, scratch_operands = 0 : i64, tpu.core_type = #tpu.core_type<tc>, window_params = [{transform_indices = @transform_0, window_bounds = array<i64: 8, 8>}, {pipeline_mode = #tpu.pipeline_mode<synchronous>, transform_indices = @transform_1, window_bounds = array<i64: 8, 64>}, {pipeline_mode = #tpu.pipeline_mode<synchronous>, transform_indices = @transform_2, window_bounds = array<i64: 1, 64>}, {pipeline_mode = #tpu.pipeline_mode<synchronous>, transform_indices = @transform_3, window_bounds = array<i64: 64, 128>}, {pipeline_mode = #tpu.pipeline_mode<synchronous>, transform_indices = @transform_4, window_bounds = array<i64: 1, 128>}, {pipeline_mode = #tpu.pipeline_mode<synchronous>, transform_indices = @transform_5, window_bounds = array<i64: 128, 128>}, {pipeline_mode = #tpu.pipeline_mode<synchronous>, transform_indices = @transform_6, window_bounds = array<i64: 1, 128>}, {transform_indices = @transform_7, window_bounds = array<i64: 8, 128>}]} {
    %c0 = arith.constant 0 : index
    %c0_0 = arith.constant 0 : index
    %0 = vector.load %arg1[%c0, %c0_0] : memref<8x8xf32, #tpu.memory_space<vmem>>, vector<8x8xf32>
    %1 = arith.truncf %0 : vector<8x8xf32> to vector<8x8xbf16>
    %c0_1 = arith.constant 0 : index
    %c0_2 = arith.constant 0 : index
    %2 = vector.load %arg2[%c0_1, %c0_2] : memref<8x64xbf16, #tpu.memory_space<vmem>>, vector<8x64xbf16>
    %cst = arith.constant dense<0.000000e+00> : vector<8x64xf32>
    %3 = tpu.matmul %1, %2, %cst {dimension_numbers = #tpu.dot_dimension_numbers<[1], [0], [0], [1], [0, 0, 1, 1], [], []>} : vector<8x8xbf16>, vector<8x64xbf16>, vector<8x64xf32> -> vector<8x64xf32>
    %c0_3 = arith.constant 0 : index
    %c0_4 = arith.constant 0 : index
    %4 = vector.load %arg3[%c0_3, %c0_4] : memref<1x64xf32, #tpu.memory_space<vmem>>, vector<1x64xf32>
    %5 = vector.broadcast %4 : vector<1x64xf32> to vector<8x64xf32>
    %6 = arith.addf %3, %5 : vector<8x64xf32>
    %cst_5 = arith.constant 0.000000e+00 : f32
    %7 = vector.broadcast %cst_5 : f32 to vector<8x64xf32>
    %8 = arith.maximumf %6, %7 : vector<8x64xf32>
    %9 = arith.truncf %8 : vector<8x64xf32> to vector<8x64xbf16>
    %c0_6 = arith.constant 0 : index
    %c0_7 = arith.constant 0 : index
    %10 = vector.load %arg4[%c0_6, %c0_7] : memref<64x128xbf16, #tpu.memory_space<vmem>>, vector<64x128xbf16>
    %cst_8 = arith.constant dense<0.000000e+00> : vector<8x128xf32>
    %11 = tpu.matmul %9, %10, %cst_8 {dimension_numbers = #tpu.dot_dimension_numbers<[1], [0], [0], [1], [0, 0, 1, 1], [], []>} : vector<8x64xbf16>, vector<64x128xbf16>, vector<8x128xf32> -> vector<8x128xf32>
    %c0_9 = arith.constant 0 : index
    %c0_10 = arith.constant 0 : index
    %12 = vector.load %arg5[%c0_9, %c0_10] : memref<1x128xf32, #tpu.memory_space<vmem>>, vector<1x128xf32>
    %13 = vector.broadcast %12 : vector<1x128xf32> to vector<8x128xf32>
    %14 = arith.addf %11, %13 : vector<8x128xf32>
    %cst_11 = arith.constant 0.000000e+00 : f32
    %15 = vector.broadcast %cst_11 : f32 to vector<8x128xf32>
    %16 = arith.maximumf %14, %15 : vector<8x128xf32>
    %17 = arith.truncf %16 : vector<8x128xf32> to vector<8x128xbf16>
    %c0_12 = arith.constant 0 : index
    %c0_13 = arith.constant 0 : index
    %18 = vector.load %arg6[%c0_12, %c0_13] : memref<128x128xbf16, #tpu.memory_space<vmem>>, vector<128x128xbf16>
    %cst_14 = arith.constant dense<0.000000e+00> : vector<8x128xf32>
    %19 = tpu.matmul %17, %18, %cst_14 {dimension_numbers = #tpu.dot_dimension_numbers<[1], [0], [0], [1], [0, 0, 1, 1], [], []>} : vector<8x128xbf16>, vector<128x128xbf16>, vector<8x128xf32> -> vector<8x128xf32>
    %c0_15 = arith.constant 0 : index
    %c0_16 = arith.constant 0 : index
    %20 = vector.load %arg7[%c0_15, %c0_16] : memref<1x128xf32, #tpu.memory_space<vmem>>, vector<1x128xf32>
    %21 = vector.broadcast %20 : vector<1x128xf32> to vector<8x128xf32>
    %22 = arith.addf %19, %21 : vector<8x128xf32>
    %cst_17 = arith.constant 0.000000e+00 : f32
    %23 = vector.broadcast %cst_17 : f32 to vector<8x128xf32>
    %24 = arith.maximumf %22, %23 : vector<8x128xf32>
    %c0_18 = arith.constant 0 : index
    %c0_19 = arith.constant 0 : index
    %25 = vector.load %arg8[%c0_18, %c0_19] : memref<8x128xf32, #tpu.memory_space<vmem>>, vector<8x128xf32>
    tpu.vector_store %arg8[%c0_18, %c0_19], %24 {strides = array<i32>} : memref<8x128xf32, #tpu.memory_space<vmem>>, vector<8x128xf32>,
    return
  }
  func.func @transform_0(%arg0: i32) -> (i32, i32) {
    %c0_i32 = arith.constant 0 : i32
    %c0_i32_0 = arith.constant 0 : i32
    return %arg0, %c0_i32 : i32, i32
  }
  func.func @transform_1(%arg0: i32) -> (i32, i32) {
    %c0_i32 = arith.constant 0 : i32
    %c0_i32_0 = arith.constant 0 : i32
    %c0_i32_1 = arith.constant 0 : i32
    return %c0_i32, %c0_i32_0 : i32, i32
  }
  func.func @transform_2(%arg0: i32) -> (i32, i32) {
    %c0_i32 = arith.constant 0 : i32
    %c0_i32_0 = arith.constant 0 : i32
    %c0_i32_1 = arith.constant 0 : i32
    return %c0_i32, %c0_i32_0 : i32, i32
  }
  func.func @transform_3(%arg0: i32) -> (i32, i32) {
    %c0_i32 = arith.constant 0 : i32
    %c0_i32_0 = arith.constant 0 : i32
    %c0_i32_1 = arith.constant 0 : i32
    return %c0_i32, %c0_i32_0 : i32, i32
  }
  func.func @transform_4(%arg0: i32) -> (i32, i32) {
    %c0_i32 = arith.constant 0 : i32
    %c0_i32_0 = arith.constant 0 : i32
    %c0_i32_1 = arith.constant 0 : i32
    return %c0_i32, %c0_i32_0 : i32, i32
  }
  func.func @transform_5(%arg0: i32) -> (i32, i32) {
    %c0_i32 = arith.constant 0 : i32
    %c0_i32_0 = arith.constant 0 : i32
    %c0_i32_1 = arith.constant 0 : i32
    return %c0_i32, %c0_i32_0 : i32, i32
  }
  func.func @transform_6(%arg0: i32) -> (i32, i32) {
    %c0_i32 = arith.constant 0 : i32
    %c0_i32_0 = arith.constant 0 : i32
    %c0_i32_1 = arith.constant 0 : i32
    return %c0_i32, %c0_i32_0 : i32, i32
  }
  func.func @transform_7(%arg0: i32) -> (i32, i32) {
    %c0_i32 = arith.constant 0 : i32
    %c0_i32_0 = arith.constant 0 : i32
    return %arg0, %c0_i32 : i32, i32
  }
}

</mosaic_0001>

<llo_original>
// kernel: fused_mlp_forward.1
$region0: #{fused_mlp_forward.1}
  #allocation0 [shape = 'u32[]', space=smem, size = 0x4, offset = 0x4, fixed_abs, tag = 'smem constant byte address 0x4 - core index']
  #allocation1 [shape = 'u32[144,128]{1,0:T(1,128)}', space=vmem, size = 0x12000, scoped, tag = 'internal scratch']
  %s0 = inlined_call_operand.hbm [shape: f32[8,8], index: 0, kind: input, shape index: {}]
  %s1 = inlined_call_operand.hbm [shape: bf16[8,64], index: 1, kind: input, shape index: {}]
  %s2 = inlined_call_operand.vmem [shape: f32[1,64], index: 2, kind: input, shape index: {}]
  %s3 = inlined_call_operand.hbm [shape: bf16[64,128], index: 3, kind: input, shape index: {}]
  %s4 = inlined_call_operand.vmem [shape: f32[1,128], index: 4, kind: input, shape index: {}]
  %s5 = inlined_call_operand.hbm [shape: bf16[128,128], index: 5, kind: input, shape index: {}]
  %s6 = inlined_call_operand.vmem [shape: f32[1,128], index: 6, kind: input, shape index: {}]
  %s7 = inlined_call_operand.vmem [shape: f32[8,128], index: 7, kind: output, shape index: {}]
  %s8 = sld [smem:[#allocation0]]
  $region54: #{fused_mlp_forward.1} parent=0
    _
  %s10 = ssub.s32 1, %s8
  %s11 = scalar_select 0, %s10, %s8
  $region1: #{fused_mlp_forward.1} parent=0
    #allocation2 [shape = 'u8[4096]{0}', space=vmem, size = 0x1000, scoped, tag = 'input window, operand 0, single buffered']
    #allocation3 [shape = 's32[1]{0}', space=sflag, size = 0x4, scoped, tag = 'scoped memory for fused_mlp_forward.1']
    #allocation4 [shape = 'u8[2048]{0}', space=vmem, size = 0x800, scoped, tag = 'input window, operand 1, single buffered']
    #allocation5 [shape = 's32[1]{0}', space=sflag, size = 0x4, scoped, tag = 'scoped memory for fused_mlp_forward.1']
    #allocation6 [shape = 'u8[16384]{0}', space=vmem, size = 0x4000, scoped, tag = 'input window, operand 3, single buffered']
    #allocation7 [shape = 'u8[32768]{0}', space=vmem, size = 0x8000, scoped, tag = 'input window, operand 5, single buffered']
    #allocation8 [shape = 's32[1]{0}', space=sflag, size = 0x4, scoped, tag = 'scoped memory for fused_mlp_forward.1']
    %12 = vsyncpa [#allocation3], 0
    %13 = vsyncpa [#allocation5], 0
    %14 = vsyncpa [#allocation8], 0
    // Predicated region
    $region2: #{fused_mlp_forward.1} parent=1 // pred_check
      _
    $region3: #{fused_mlp_forward.1} parent=1 // pred_check_branch
      %16 = sbr.rel (0) target = $region5
    $region4: #{fused_mlp_forward.1} parent=1 // pred_region
      %s18 = ssub.s32 128, 128
      %19 = vsyncadd [#allocation3], %s18
      %s21 = sshll.u32 [#allocation2], 4
      %s22 = int_to_ptr.vmem [resolvable:$true] %s21
      %24 = dma.hbm_to_vmem [thread:$0]  %s0, 128, %s22, [#allocation3]
    $region5: #{fused_mlp_forward.1} parent=1 // pred_fallthru
      _
    // Predicated region
    $region6: #{fused_mlp_forward.1} parent=1 // pred_check
      _
    $region7: #{fused_mlp_forward.1} parent=1 // pred_check_branch
      %26 = sbr.rel (0) target = $region9
    $region8: #{fused_mlp_forward.1} parent=1 // pred_region
      %s28 = ssub.s32 64, 64
      %29 = vsyncadd [#allocation5], %s28
      %s31 = sshll.u32 [#allocation4], 4
      %s32 = int_to_ptr.vmem [resolvable:$true] %s31
      %34 = dma.hbm_to_vmem [thread:$0]  %s1, 64, %s32, [#allocation5]
    $region9: #{fused_mlp_forward.1} parent=1 // pred_fallthru
      _
    // Predicated region
    $region10: #{fused_mlp_forward.1} parent=1 // pred_check
      _
    $region11: #{fused_mlp_forward.1} parent=1 // pred_check_branch
      %36 = sbr.rel (0) target = $region13
    $region12: #{fused_mlp_forward.1} parent=1 // pred_region
      _
    $region13: #{fused_mlp_forward.1} parent=1 // pred_fallthru
      _
    // Predicated region
    $region14: #{fused_mlp_forward.1} parent=1 // pred_check
      _
    $region15: #{fused_mlp_forward.1} parent=1 // pred_check_branch
      %38 = sbr.rel (0) target = $region17
    $region16: #{fused_mlp_forward.1} parent=1 // pred_region
      %s40 = ssub.s32 512, 512
      %41 = vsyncadd [#allocation5], %s40
      %s42 = sshll.u32 [#allocation6], 4
      %s43 = int_to_ptr.vmem [resolvable:$true] %s42
      %48 = dma.hbm_to_vmem [thread:$0]  %s3, 512, %s43, [#allocation5], 64, 64, 4
    $region17: #{fused_mlp_forward.1} parent=1 // pred_fallthru
      _
    // Predicated region
    $region18: #{fused_mlp_forward.1} parent=1 // pred_check
      _
    $region19: #{fused_mlp_forward.1} parent=1 // pred_check_branch
      %50 = sbr.rel (0) target = $region21
    $region20: #{fused_mlp_forward.1} parent=1 // pred_region
      _
    $region21: #{fused_mlp_forward.1} parent=1 // pred_fallthru
      _
    // Predicated region
    $region22: #{fused_mlp_forward.1} parent=1 // pred_check
      _
    $region23: #{fused_mlp_forward.1} parent=1 // pred_check_branch
      %52 = sbr.rel (0) target = $region25
    $region24: #{fused_mlp_forward.1} parent=1 // pred_region
      %s54 = ssub.s32 1024, 1024
      %55 = vsyncadd [#allocation8], %s54
      %s56 = sshll.u32 [#allocation7], 4
      %s57 = int_to_ptr.vmem [resolvable:$true] %s56
      %62 = dma.hbm_to_vmem [thread:$0]  %s5, 1024, %s57, [#allocation8], 64, 64, 4
    $region25: #{fused_mlp_forward.1} parent=1 // pred_fallthru
      _
    // Predicated region
    $region26: #{fused_mlp_forward.1} parent=1 // pred_check
      _
    $region27: #{fused_mlp_forward.1} parent=1 // pred_check_branch
      %64 = sbr.rel (0) target = $region29
    $region28: #{fused_mlp_forward.1} parent=1 // pred_region
      _
    $region29: #{fused_mlp_forward.1} parent=1 // pred_fallthru
      _
    // Predicated region
    $region30: #{fused_mlp_forward.1} parent=1 // pred_check
      _
    $region31: #{fused_mlp_forward.1} parent=1 // pred_check_branch
      %66 = sbr.rel (0) target = $region33
    $region32: #{fused_mlp_forward.1} parent=1 // pred_region
      %67 = dma.done [#allocation3], 128
    $region33: #{fused_mlp_forward.1} parent=1 // pred_fallthru
      _
    // Predicated region
    $region34: #{fused_mlp_forward.1} parent=1 // pred_check
      _
    $region35: #{fused_mlp_forward.1} parent=1 // pred_check_branch
      %69 = sbr.rel (0) target = $region37
    $region36: #{fused_mlp_forward.1} parent=1 // pred_region
      %70 = dma.done [#allocation5], 64
    $region37: #{fused_mlp_forward.1} parent=1 // pred_fallthru
      _
    // Predicated region
    $region38: #{fused_mlp_forward.1} parent=1 // pred_check
      _
    $region39: #{fused_mlp_forward.1} parent=1 // pred_check_branch
      %72 = sbr.rel (0) target = $region41
    $region40: #{fused_mlp_forward.1} parent=1 // pred_region
      %73 = dma.done [#allocation5], 512
    $region41: #{fused_mlp_forward.1} parent=1 // pred_fallthru
      _
    // Predicated region
    $region42: #{fused_mlp_forward.1} parent=1 // pred_check
      _
    $region43: #{fused_mlp_forward.1} parent=1 // pred_check_branch
      %75 = sbr.rel (0) target = $region45
    $region44: #{fused_mlp_forward.1} parent=1 // pred_region
      %76 = dma.done [#allocation8], 1024
    $region45: #{fused_mlp_forward.1} parent=1 // pred_fallthru
      _
    %v78 = vld [vmem:[#allocation2] sm:$0xff]
    %v79 = vpack.c.bf16 %v78, %v78
    %v80 = vld [vmem:[#allocation4] sm:$0xf]
    %v81 = vld [vmem:[%s2] sm:$0x1]
    %v83 = vlaneseq
    %v84 = vshrl.u32 %v83, 7
    %v85 = vsub.s32 0, %v84
    %v86 = vrot.slane %v81, %v85
    %vm88 = vcmask 64512
    %v90 = vsel %vm88, %v79, 0
    %vm92 = vcmask 1043456
    %v94 = vsel %vm92, %v80, 0
    %96 = vmatprep.subr.bf16.mxu0 0
    %97 = vmatpush1.bf16.msra.mxu0 0
    %98 = vmatprep.subr.bf16.mxu0 0
    %99 = vmatpush1.bf16.msra.mxu0 0
    %100 = vmatprep.subr.bf16.mxu0 0
    %101 = vmatpush1.bf16.msra.mxu0 0
    %102 = vmatprep.subr.bf16.mxu0 0
    %103 = vmatpush1.bf16.msra.mxu0 0
    %104 = vmatprep.subr.bf16.mxu0 0
    %105 = vmatpush1.bf16.msra.mxu0 0
    %106 = vmatprep.subr.bf16.mxu0 0
    %107 = vmatpush1.bf16.msra.mxu0 0
    %108 = vmatprep.subr.bf16.mxu0 0
    %109 = vmatpush1.bf16.msra.mxu0 0
    %110 = vmatprep.subr.bf16.mxu0 0
    %111 = vmatpush1.bf16.msra.mxu0 %v94
    %112 = vmatprep.subr.bf16.mxu0 0
    %113 = vmatpush2.bf16.msra.mxu0 0
    %114 = vmatprep.subr.bf16.mxu0 0
    %115 = vmatpush2.bf16.msra.mxu0 0
    %116 = vmatprep.subr.bf16.mxu0 0
    %117 = vmatpush2.bf16.msra.mxu0 0
    %118 = vmatprep.subr.bf16.mxu0 0
    %119 = vmatpush2.bf16.msra.mxu0 0
    %120 = vmatprep.subr.bf16.mxu0 0
    %121 = vmatpush2.bf16.msra.mxu0 0
    %122 = vmatprep.subr.bf16.mxu0 0
    %123 = vmatpush2.bf16.msra.mxu0 0
    %124 = vmatprep.subr.bf16.mxu0 0
    %125 = vmatpush2.bf16.msra.mxu0 0
    %126 = vmatprep.subr.bf16.mxu0 0
    %127 = vmatpush2.bf16.msra.mxu0 0
    %128 = vmatprep.mubr.bf16.mxu0 0
    %129 = vmatmul.mubr.bf16.gmra.mxu0 %v90
    %v130 = vpop.f32.mrf.mxu0
    %v131 = vadd.f32 %v86, %v130
    %v132 = vpop.f32.mrf.mxu0
    %v133 = vpop.f32.mrf.mxu0
    %v134 = vpop.f32.mrf.mxu0
    %135 = vdwg.mxu0
    %v136 = vmax.f32 %v131, 0.0
    %v137 = vpack.c.bf16 %v136, %v136
    %v138 = vld [vmem:[#allocation6] sm:$0xf]
    %v139 = vld [vmem:[#allocation6 + $0x4] sm:$0xf]
    %v140 = vld [vmem:[#allocation6 + $0x8] sm:$0xf]
    %v141 = vld [vmem:[#allocation6 + $0xc] sm:$0xf]
    %v142 = vld [vmem:[#allocation6 + $0x10] sm:$0xf]
    %v143 = vld [vmem:[#allocation6 + $0x14] sm:$0xf]
    %v144 = vld [vmem:[#allocation6 + $0x18] sm:$0xf]
    %v145 = vld [vmem:[#allocation6 + $0x1c] sm:$0xf]
    %v146 = vld [vmem:[%s4] sm:$0x1]
    %v148 = vlaneseq
    %v149 = vshrl.u32 %v148, 7
    %v150 = vsub.s32 0, %v149
    %v151 = vrot.slane %v146, %v150
    %v161 = vunpack.c.l.b16 %v138
    %v162 = vunpack.c.l.b16 %v139
    %v163 = vunpack.c.l.b16 %v140
    %v164 = vunpack.c.l.b16 %v141
    %v165 = vunpack.c.l.b16 %v142
    %v166 = vunpack.c.l.b16 %v143
    %v167 = vunpack.c.l.b16 %v144
    %v168 = vunpack.c.l.b16 %v145
    %v169 = vpack.c.b16 %v162, %v161
    %v170 = vpack.c.b16 %v164, %v163
    %v171 = vpack.c.b16 %v166, %v165
    %v172 = vpack.c.b16 %v168, %v167
    %vm177 = vcmask 523264
    %v179 = vsel %vm177, %v137, 0
    %181 = vmatprep.subr.bf16.mxu0 0
    %182 = vmatpush1.bf16.msra.mxu0 0
    %183 = vmatprep.subr.bf16.mxu0 0
    %184 = vmatpush1.bf16.msra.mxu0 0
    %185 = vmatprep.subr.bf16.mxu0 0
    %186 = vmatpush1.bf16.msra.mxu0 0
    %187 = vmatprep.subr.bf16.mxu0 0
    %188 = vmatpush1.bf16.msra.mxu0 0
    %189 = vmatprep.subr.bf16.mxu0 0
    %190 = vmatpush1.bf16.msra.mxu0 %v172
    %191 = vmatprep.subr.bf16.mxu0 0
    %192 = vmatpush1.bf16.msra.mxu0 %v171
    %193 = vmatprep.subr.bf16.mxu0 0
    %194 = vmatpush1.bf16.msra.mxu0 %v170
    %195 = vmatprep.subr.bf16.mxu0 0
    %196 = vmatpush1.bf16.msra.mxu0 %v169
    %197 = vmatprep.subr.bf16.mxu0 0
    %198 = vmatpush2.bf16.msra.mxu0 0
    %199 = vmatprep.subr.bf16.mxu0 0
    %200 = vmatpush2.bf16.msra.mxu0 0
    %201 = vmatprep.subr.bf16.mxu0 0
    %202 = vmatpush2.bf16.msra.mxu0 0
    %203 = vmatprep.subr.bf16.mxu0 0
    %204 = vmatpush2.bf16.msra.mxu0 0
    %205 = vmatprep.subr.bf16.mxu0 0
    %206 = vmatpush2.bf16.msra.mxu0 0
    %207 = vmatprep.subr.bf16.mxu0 0
    %208 = vmatpush2.bf16.msra.mxu0 0
    %209 = vmatprep.subr.bf16.mxu0 0
    %210 = vmatpush2.bf16.msra.mxu0 0
    %211 = vmatprep.subr.bf16.mxu0 0
    %212 = vmatpush2.bf16.msra.mxu0 0
    %213 = vmatprep.mubr.bf16.mxu0 0
    %214 = vmatmul.mubr.bf16.gmra.mxu0 %v179
    %v215 = vpop.f32.mrf.mxu0
    %v216 = vadd.f32 %v151, %v215
    %v217 = vpop.f32.mrf.mxu0
    %v218 = vpop.f32.mrf.mxu0
    %v219 = vpop.f32.mrf.mxu0
    %220 = vdwg.mxu0
    %v221 = vmax.f32 %v216, 0.0
    %v222 = vpack.c.bf16 %v221, %v221
    %v223 = vld [vmem:[#allocation7] sm:$0xf]
    %v224 = vld [vmem:[#allocation7 + $0x4] sm:$0xf]
    %v225 = vld [vmem:[#allocation7 + $0x8] sm:$0xf]
    %v226 = vld [vmem:[#allocation7 + $0xc] sm:$0xf]
    %v227 = vld [vmem:[#allocation7 + $0x10] sm:$0xf]
    %v228 = vld [vmem:[#allocation7 + $0x14] sm:$0xf]
    %v229 = vld [vmem:[#allocation7 + $0x18] sm:$0xf]
    %v230 = vld [vmem:[#allocation7 + $0x1c] sm:$0xf]
    %v231 = vld [vmem:[#allocation7 + $0x20] sm:$0xf]
    %v232 = vld [vmem:[#allocation7 + $0x24] sm:$0xf]
    %v233 = vld [vmem:[#allocation7 + $0x28] sm:$0xf]
    %v234 = vld [vmem:[#allocation7 + $0x2c] sm:$0xf]
    %v235 = vld [vmem:[#allocation7 + $0x30] sm:$0xf]
    %v236 = vld [vmem:[#allocation7 + $0x34] sm:$0xf]
    %v237 = vld [vmem:[#allocation7 + $0x38] sm:$0xf]
    %v238 = vld [vmem:[#allocation7 + $0x3c] sm:$0xf]
    %v239 = vld [vmem:[%s6] sm:$0x1]
    %v241 = vlaneseq
    %v242 = vshrl.u32 %v241, 7
    %v243 = vsub.s32 0, %v242
    %v244 = vrot.slane %v239, %v243
    %v262 = vunpack.c.l.b16 %v223
    %v263 = vunpack.c.l.b16 %v224
    %v264 = vunpack.c.l.b16 %v225
    %v265 = vunpack.c.l.b16 %v226
    %v266 = vunpack.c.l.b16 %v227
    %v267 = vunpack.c.l.b16 %v228
    %v268 = vunpack.c.l.b16 %v229
    %v269 = vunpack.c.l.b16 %v230
    %v270 = vunpack.c.l.b16 %v231
    %v271 = vunpack.c.l.b16 %v232
    %v272 = vunpack.c.l.b16 %v233
    %v273 = vunpack.c.l.b16 %v234
    %v274 = vunpack.c.l.b16 %v235
    %v275 = vunpack.c.l.b16 %v236
    %v276 = vunpack.c.l.b16 %v237
    %v277 = vunpack.c.l.b16 %v238
    %v278 = vpack.c.b16 %v263, %v262
    %v279 = vpack.c.b16 %v265, %v264
    %v280 = vpack.c.b16 %v267, %v266
    %v281 = vpack.c.b16 %v269, %v268
    %v282 = vpack.c.b16 %v271, %v270
    %v283 = vpack.c.b16 %v273, %v272
    %v284 = vpack.c.b16 %v275, %v274
    %v285 = vpack.c.b16 %v277, %v276
    %294 = vmatprep.subr.bf16.mxu0 0
    %295 = vmatpush1.bf16.msra.mxu0 %v285
    %296 = vmatprep.subr.bf16.mxu0 0
    %297 = vmatpush1.bf16.msra.mxu0 %v284
    %298 = vmatprep.subr.bf16.mxu0 0
    %299 = vmatpush1.bf16.msra.mxu0 %v283
    %300 = vmatprep.subr.bf16.mxu0 0
    %301 = vmatpush1.bf16.msra.mxu0 %v282
    %302 = vmatprep.subr.bf16.mxu0 0
    %303 = vmatpush1.bf16.msra.mxu0 %v281
    %304 = vmatprep.subr.bf16.mxu0 0
    %305 = vmatpush1.bf16.msra.mxu0 %v280
    %306 = vmatprep.subr.bf16.mxu0 0
    %307 = vmatpush1.bf16.msra.mxu0 %v279
    %308 = vmatprep.subr.bf16.mxu0 0
    %309 = vmatpush1.bf16.msra.mxu0 %v278
    %310 = vmatprep.subr.bf16.mxu0 0
    %311 = vmatpush2.bf16.msra.mxu0 0
    %312 = vmatprep.subr.bf16.mxu0 0
    %313 = vmatpush2.bf16.msra.mxu0 0
    %314 = vmatprep.subr.bf16.mxu0 0
    %315 = vmatpush2.bf16.msra.mxu0 0
    %316 = vmatprep.subr.bf16.mxu0 0
    %317 = vmatpush2.bf16.msra.mxu0 0
    %318 = vmatprep.subr.bf16.mxu0 0
    %319 = vmatpush2.bf16.msra.mxu0 0
    %320 = vmatprep.subr.bf16.mxu0 0
    %321 = vmatpush2.bf16.msra.mxu0 0
    %322 = vmatprep.subr.bf16.mxu0 0
    %323 = vmatpush2.bf16.msra.mxu0 0
    %324 = vmatprep.subr.bf16.mxu0 0
    %325 = vmatpush2.bf16.msra.mxu0 0
    %326 = vmatprep.mubr.bf16.mxu0 0
    %327 = vmatmul.mubr.bf16.gmra.mxu0 %v222
    %v328 = vpop.f32.mrf.mxu0
    %v329 = vadd.f32 %v244, %v328
    %v330 = vpop.f32.mrf.mxu0
    %v331 = vpop.f32.mrf.mxu0
    %v332 = vpop.f32.mrf.mxu0
    %333 = vdwg.mxu0
    %v334 = vmax.f32 %v329, 0.0
    %335 = vst [vmem:[%s7] sm:$0xff] %v334
    // Predicated region
    $region46: #{fused_mlp_forward.1} parent=1 // pred_check
      _
    $region47: #{fused_mlp_forward.1} parent=1 // pred_check_branch
      %337 = sbr.rel (0) target = $region49
    $region48: #{fused_mlp_forward.1} parent=1 // pred_region
      _
    $region49: #{fused_mlp_forward.1} parent=1 // pred_fallthru
      _
    // Predicated region
    $region50: #{fused_mlp_forward.1} parent=1 // pred_check
      _
    $region51: #{fused_mlp_forward.1} parent=1 // pred_check_branch
      %339 = sbr.rel (0) target = $region53
    $region52: #{fused_mlp_forward.1} parent=1 // pred_region
      _
    $region53: #{fused_mlp_forward.1} parent=1 // pred_fallthru
      _
    %340 = vsyncpa [#allocation3], 1
    %341 = vsyncpa [#allocation5], 1
    %342 = vsyncpa [#allocation8], 1

</llo_original>
